<compile_context>
chip_gen: v5e
topology: v5e:2x2
jax: 0.10.0
libtpu: 0.0.40
codegen_flags: <defaults>
</compile_context>

<pallas_src>
import functools

import jax
import jax.numpy as jnp
from jax import lax
from jax.experimental import pallas as pl
from jax.experimental.pallas import tpu as pltpu

IMAGE_SIZE = 32            # nr default is 256; small for the demo
VIEWING_ANGLE_DEG = 30.0   # nr.Renderer default viewing angle
LANES = 128                # TPU vreg lane width


# ---------------------------------------------------------------------------
# Pallas kernel: rasterize silhouette + squared-error loss reduction
# ---------------------------------------------------------------------------
def silhouette_loss_kernel(face_coef_ref, ref_img_ref, loss_ref, *sil_refs, width):
    rows, lanes = ref_img_ref.shape                 # lane-dense (H*W // 128, 128) layout
    n_faces = face_coef_ref.shape[0] // 9           # static

    # Pixel coordinates from pure iota + mask/shift: width is a static power of two and
    # lanes % width == 0, so no int mul/divmod is lowered (review: cheaper prologue).
    log2_w = width.bit_length() - 1
    lane_i = lax.broadcasted_iota(jnp.int32, (rows, lanes), 1)
    sub_i = lax.broadcasted_iota(jnp.int32, (rows, lanes), 0)
    xx = (lane_i & (width - 1)).astype(jnp.float32)                         # column
    yy = (sub_i * (lanes // width) + (lane_i >> log2_w)).astype(jnp.float32)  # row
    # (+0.5 pixel-center offset is folded into C on the wrapper side.)

    # Face loop fully unrolled (n_faces is a Python constant): gives the scheduler full
    # cross-iteration visibility.  Coverage test per face is min(e0, e1, e2) >= 0 (review:
    # saves 2 VALU ops/face vs 3 compares + 2 ANDs); coverage accumulates as a boolean mask
    # with a single float32 cast after the loop.
    covered = jnp.zeros((rows, lanes), jnp.bool_)
    for f in range(n_faces):
        base = 9 * f
        a0 = face_coef_ref[base + 0]; b0 = face_coef_ref[base + 1]; c0 = face_coef_ref[base + 2]
        a1 = face_coef_ref[base + 3]; b1 = face_coef_ref[base + 4]; c1 = face_coef_ref[base + 5]
        a2 = face_coef_ref[base + 6]; b2 = face_coef_ref[base + 7]; c2 = face_coef_ref[base + 8]
        e0 = a0 * xx + b0 * yy + c0
        e1 = a1 * xx + b1 * yy + c1
        e2 = a2 * xx + b2 * yy + c2
        covered = covered | (jnp.minimum(jnp.minimum(e0, e1), e2) >= 0.0)

    sil = covered.astype(jnp.float32)
    if sil_refs:                                    # silhouette output is optional (loss-only
        sil_refs[0][...] = sil                      # training steps skip this writeback DMA)

    # loss = sum((image - image_ref)**2)
    diff = sil - ref_img_ref[...]
    loss_ref[0, 0] = jnp.sum(diff * diff)


def render_silhouette_loss(face_coef, image_ref, return_silhouette=True):
    """face_coef: (F*9,) f32 winding-normalized edge coefficients. image_ref: (H, W) f32."""
    H, W = image_ref.shape
    assert W & (W - 1) == 0, "image width must be a power of two"
    assert LANES % W == 0 and (H * W) % LANES == 0, "image must flatten to multiples of 128 lanes"
    rows = (H * W) // LANES
    ref_flat = image_ref.reshape(rows, LANES)       # lane-dense working layout

    out_shape = [jax.ShapeDtypeStruct((1, 1), jnp.float32)]                 # scalar loss
    out_specs = [pl.BlockSpec(memory_space=pltpu.MemorySpace.SMEM)]
    if return_silhouette:
        out_shape.append(jax.ShapeDtypeStruct((rows, LANES), jnp.float32))  # silhouette
        out_specs.append(pl.BlockSpec(memory_space=pltpu.MemorySpace.VMEM))

    outs = pl.pallas_call(
        functools.partial(silhouette_loss_kernel, width=W),
        out_shape=tuple(out_shape),
        in_specs=[
            pl.BlockSpec(memory_space=pltpu.MemorySpace.SMEM),  # 1-D edge coefficients -> SMEM
            pl.BlockSpec(memory_space=pltpu.MemorySpace.VMEM),  # reference image -> VMEM
        ],
        out_specs=tuple(out_specs),
    )(face_coef, ref_flat)

    loss = outs[0][0, 0]
    if return_silhouette:
        return loss, outs[1].reshape(H, W)
    return loss, None


# ---------------------------------------------------------------------------
# Plain-JAX glue: camera look_at + perspective projection + edge coefficients
# (mirrors nr.Renderer(camera_mode='look_at') geometry pipeline; fused by jit)
# ---------------------------------------------------------------------------
def look_at(vertices, eye, at=(0.0, 0.0, 0.0), up=(0.0, 1.0, 0.0)):
    eye = jnp.asarray(eye, jnp.float32)
    at = jnp.asarray(at, jnp.float32)
    up = jnp.asarray(up, jnp.float32)
    z = at - eye
    z = z / jnp.linalg.norm(z)
    x = jnp.cross(up, z)
    x = x / jnp.linalg.norm(x)
    y = jnp.cross(z, x)
    y = y / jnp.linalg.norm(y)
    R = jnp.stack([x, y, z], axis=0)               # (3, 3)
    return (vertices - eye) @ R.T                  # camera-space vertices


def perspective(vertices, angle_deg=VIEWING_ANGLE_DEG):
    w = jnp.tan(jnp.deg2rad(jnp.float32(angle_deg)))
    z = vertices[..., 2]
    x = vertices[..., 0] / (z * w)
    y = vertices[..., 1] / (z * w)
    return jnp.stack([x, y, z], axis=-1)


def project_faces_to_edge_coefs(vertices, faces, eye, image_size, near=1e-2):
    """vertices: (1, V, 3) f32, faces: (1, F, 3) i32 -> (F*9,) f32 edge-plane coefficients.

    Per face, 3 edge functions e_i(x, y) = A_i*x + B_i*y + C_i are winding-normalized so that a
    pixel (integer grid coords; the half-pixel center offset is folded into C_i here) is covered
    iff all three e_i >= 0; degenerate / behind-near-plane faces cover nothing.
    """
    v_cam = look_at(vertices[0], eye)                # (V, 3) camera space
    v_ndc = perspective(v_cam)                       # (V, 3) NDC
    px = (v_ndc[:, 0] + 1.0) * 0.5 * image_size      # pixel coords
    py = (1.0 - v_ndc[:, 1]) * 0.5 * image_size      # y flipped: row 0 is the top of the image
    scr = jnp.stack([px, py], axis=-1)               # (V, 2)
    tri = jnp.take(scr, faces[0], axis=0)            # (F, 3, 2)
    z_tri = jnp.take(v_cam[:, 2], faces[0], axis=0)  # (F, 3) camera-space depth per vertex

    x0, y0 = tri[:, 0, 0], tri[:, 0, 1]
    x1, y1 = tri[:, 1, 0], tri[:, 1, 1]
    x2, y2 = tri[:, 2, 0], tri[:, 2, 1]

    def edge(xa, ya, xb, yb):
        # e(x, y) = (xb-xa)*(y-ya) - (yb-ya)*(x-xa) = A*x + B*y + C,
        # with the half-pixel center offset folded in: C' = C + 0.5*A + 0.5*B.
        A = -(yb - ya)
        B = xb - xa
        C = (yb - ya) * xa - (xb - xa) * ya
        return A, B, C + 0.5 * (A + B)

    A0, B0, C0 = edge(x0, y0, x1, y1)
    A1, B1, C1 = edge(x1, y1, x2, y2)
    A2, B2, C2 = edge(x2, y2, x0, y0)

    # Twice the signed area (evaluate the raw edge plane at vertex 2, without the pixel offset).
    area2 = A0 * x2 + B0 * y2 + (C0 - 0.5 * (A0 + B0))
    # Degenerate (tiny-area) or behind-near-plane faces cover nothing.
    invalid = (jnp.abs(area2) <= 1e-8) | (jnp.min(z_tri, axis=-1) <= near)
    s = jnp.where(invalid, 0.0, jnp.sign(area2))

    coefs = jnp.stack([A0, B0, C0, A1, B1, C1, A2, B2, C2], axis=-1) * s[:, None]
    # Invalid faces must cover nothing: force e0 = -1 everywhere for them.
    coefs = coefs.at[:, 2].add(jnp.where(invalid, -1.0, 0.0))
    return coefs.reshape(-1).astype(jnp.float32)     # flat 1-D -> cheap SMEM padding


# ---------------------------------------------------------------------------
# Deterministic mesh / parameters (shapes implied by the module's __init__)
# ---------------------------------------------------------------------------
def make_cube():
    verts = jnp.array(
        [[-0.5, -0.5, -0.5], [0.5, -0.5, -0.5], [0.5, 0.5, -0.5], [-0.5, 0.5, -0.5],
         [-0.5, -0.5,  0.5], [0.5, -0.5,  0.5], [0.5, 0.5,  0.5], [-0.5, 0.5,  0.5]],
        dtype=jnp.float32)
    faces = jnp.array(
        [[0, 1, 2], [0, 2, 3], [4, 6, 5], [4, 7, 6],
         [0, 4, 5], [0, 5, 1], [1, 5, 6], [1, 6, 2],
         [2, 6, 7], [2, 7, 3], [3, 7, 4], [3, 4, 0]],
        dtype=jnp.int32)
    return verts[None], faces[None]                  # (1, 8, 3), (1, 12, 3)


# One jitted computation: all projection / edge-coefficient glue fuses into a single XLA program
# feeding the pallas_call (the dominant cost at this size was eager dispatch + glue overhead).
@functools.partial(jax.jit, static_argnames=("return_silhouette",))
def model_morphing_forward(vertices, faces, image_ref, camera_x, camera_y, camera_z,
                           return_silhouette=True):
    face_coef = project_faces_to_edge_coefs(
        vertices, faces, (camera_x, camera_y, camera_z), IMAGE_SIZE)
    return render_silhouette_loss(face_coef, image_ref, return_silhouette=return_silhouette)


if __name__ == "__main__":
    key = jax.random.PRNGKey(0)

    # nn.Parameter(vertices) / register_buffer(faces): deterministic cube mesh.
    vertices, faces = make_cube()

    # textures buffer (1, F, 2, 2, 2, 3) of ones — unused in 'silhouettes' forward, kept for parity.
    textures = jnp.ones((1, faces.shape[1], 2, 2, 2, 3), jnp.float32)

    # image_ref buffer: synthetic grayscale reference image in [0, 1], shape (1, H, W).
    image_ref = jax.random.uniform(key, (1, IMAGE_SIZE, IMAGE_SIZE), jnp.float32)

    camera_x, camera_y, camera_z = 0.0, 0.0, -2.732

    loss, sil = model_morphing_forward(vertices, faces, image_ref[0],
                                       camera_x, camera_y, camera_z)
    jax.block_until_ready(loss)
    jax.block_until_ready(sil)
    print("KERNEL_OK")
</pallas_src>

<mosaic_0001>
module attributes {stable_mosaic.version = 11 : i64} {
  func.func @silhouette_loss_kernel(%arg0: memref<108xf32, #tpu.memory_space<smem>>, %arg1: memref<8x128xf32, #tpu.memory_space<vmem>>, %arg2: memref<1x1xf32, #tpu.memory_space<smem>>, %arg3: memref<8x128xf32, #tpu.memory_space<vmem>>) attributes {dimension_semantics = [], scalar_prefetch = 0 : i64, scratch_operands = 0 : i64, tpu.core_type = #tpu.core_type<tc>} {
    %0 = tpu.iota {dimensions = array<i32: 1>} : vector<8x128xi32>
    %1 = tpu.iota {dimensions = array<i32: 0>} : vector<8x128xi32>
    %c31_i32 = arith.constant 31 : i32
    %2 = vector.broadcast %c31_i32 : i32 to vector<8x128xi32>
    %3 = arith.andi %0, %2 : vector<8x128xi32>
    %4 = arith.sitofp %3 : vector<8x128xi32> to vector<8x128xf32>
    %c4_i32 = arith.constant 4 : i32
    %5 = vector.broadcast %c4_i32 : i32 to vector<8x128xi32>
    %6 = arith.muli %1, %5 : vector<8x128xi32>
    %c5_i32 = arith.constant 5 : i32
    %7 = vector.broadcast %c5_i32 : i32 to vector<8x128xi32>
    %8 = arith.shrsi %0, %7 : vector<8x128xi32>
    %9 = arith.addi %6, %8 : vector<8x128xi32>
    %10 = arith.sitofp %9 : vector<8x128xi32> to vector<8x128xf32>
    %false = arith.constant false
    %11 = vector.broadcast %false : i1 to vector<8x128xi1>
    %c0 = arith.constant 0 : index
    %12 = memref.load %arg0[%c0] : memref<108xf32, #tpu.memory_space<smem>>
    %c1 = arith.constant 1 : index
    %13 = memref.load %arg0[%c1] : memref<108xf32, #tpu.memory_space<smem>>
    %c2 = arith.constant 2 : index
    %14 = memref.load %arg0[%c2] : memref<108xf32, #tpu.memory_space<smem>>
    %c3 = arith.constant 3 : index
    %15 = memref.load %arg0[%c3] : memref<108xf32, #tpu.memory_space<smem>>
    %c4 = arith.constant 4 : index
    %16 = memref.load %arg0[%c4] : memref<108xf32, #tpu.memory_space<smem>>
    %c5 = arith.constant 5 : index
    %17 = memref.load %arg0[%c5] : memref<108xf32, #tpu.memory_space<smem>>
    %c6 = arith.constant 6 : index
    %18 = memref.load %arg0[%c6] : memref<108xf32, #tpu.memory_space<smem>>
    %c7 = arith.constant 7 : index
    %19 = memref.load %arg0[%c7] : memref<108xf32, #tpu.memory_space<smem>>
    %c8 = arith.constant 8 : index
    %20 = memref.load %arg0[%c8] : memref<108xf32, #tpu.memory_space<smem>>
    %21 = vector.broadcast %12 : f32 to vector<8x128xf32>
    %22 = arith.mulf %21, %4 : vector<8x128xf32>
    %23 = vector.broadcast %13 : f32 to vector<8x128xf32>
    %24 = arith.mulf %23, %10 : vector<8x128xf32>
    %25 = arith.addf %22, %24 : vector<8x128xf32>
    %26 = vector.broadcast %14 : f32 to vector<8x128xf32>
    %27 = arith.addf %25, %26 : vector<8x128xf32>
    %28 = vector.broadcast %15 : f32 to vector<8x128xf32>
    %29 = arith.mulf %28, %4 : vector<8x128xf32>
    %30 = vector.broadcast %16 : f32 to vector<8x128xf32>
    %31 = arith.mulf %30, %10 : vector<8x128xf32>
    %32 = arith.addf %29, %31 : vector<8x128xf32>
    %33 = vector.broadcast %17 : f32 to vector<8x128xf32>
    %34 = arith.addf %32, %33 : vector<8x128xf32>
    %35 = vector.broadcast %18 : f32 to vector<8x128xf32>
    %36 = arith.mulf %35, %4 : vector<8x128xf32>
    %37 = vector.broadcast %19 : f32 to vector<8x128xf32>
    %38 = arith.mulf %37, %10 : vector<8x128xf32>
    %39 = arith.addf %36, %38 : vector<8x128xf32>
    %40 = vector.broadcast %20 : f32 to vector<8x128xf32>
    %41 = arith.addf %39, %40 : vector<8x128xf32>
    %42 = arith.minimumf %27, %34 : vector<8x128xf32>
    %43 = arith.minimumf %42, %41 : vector<8x128xf32>
    %cst = arith.constant 0.000000e+00 : f32
    %44 = vector.broadcast %cst : f32 to vector<8x128xf32>
    %45 = arith.cmpf oge, %43, %44 : vector<8x128xf32>
    %46 = arith.ori %11, %45 : vector<8x128xi1>
    %c9 = arith.constant 9 : index
    %47 = memref.load %arg0[%c9] : memref<108xf32, #tpu.memory_space<smem>>
    %c10 = arith.constant 10 : index
    %48 = memref.load %arg0[%c10] : memref<108xf32, #tpu.memory_space<smem>>
    %c11 = arith.constant 11 : index
    %49 = memref.load %arg0[%c11] : memref<108xf32, #tpu.memory_space<smem>>
    %c12 = arith.constant 12 : index
    %50 = memref.load %arg0[%c12] : memref<108xf32, #tpu.memory_space<smem>>
    %c13 = arith.constant 13 : index
    %51 = memref.load %arg0[%c13] : memref<108xf32, #tpu.memory_space<smem>>
    %c14 = arith.constant 14 : index
    %52 = memref.load %arg0[%c14] : memref<108xf32, #tpu.memory_space<smem>>
    %c15 = arith.constant 15 : index
    %53 = memref.load %arg0[%c15] : memref<108xf32, #tpu.memory_space<smem>>
    %c16 = arith.constant 16 : index
    %54 = memref.load %arg0[%c16] : memref<108xf32, #tpu.memory_space<smem>>
    %c17 = arith.constant 17 : index
    %55 = memref.load %arg0[%c17] : memref<108xf32, #tpu.memory_space<smem>>
    %56 = vector.broadcast %47 : f32 to vector<8x128xf32>
    %57 = arith.mulf %56, %4 : vector<8x128xf32>
    %58 = vector.broadcast %48 : f32 to vector<8x128xf32>
    %59 = arith.mulf %58, %10 : vector<8x128xf32>
    %60 = arith.addf %57, %59 : vector<8x128xf32>
    %61 = vector.broadcast %49 : f32 to vector<8x128xf32>
    %62 = arith.addf %60, %61 : vector<8x128xf32>
    %63 = vector.broadcast %50 : f32 to vector<8x128xf32>
    %64 = arith.mulf %63, %4 : vector<8x128xf32>
    %65 = vector.broadcast %51 : f32 to vector<8x128xf32>
    %66 = arith.mulf %65, %10 : vector<8x128xf32>
    %67 = arith.addf %64, %66 : vector<8x128xf32>
    %68 = vector.broadcast %52 : f32 to vector<8x128xf32>
    %69 = arith.addf %67, %68 : vector<8x128xf32>
    %70 = vector.broadcast %53 : f32 to vector<8x128xf32>
    %71 = arith.mulf %70, %4 : vector<8x128xf32>
    %72 = vector.broadcast %54 : f32 to vector<8x128xf32>
    %73 = arith.mulf %72, %10 : vector<8x128xf32>
    %74 = arith.addf %71, %73 : vector<8x128xf32>
    %75 = vector.broadcast %55 : f32 to vector<8x128xf32>
    %76 = arith.addf %74, %75 : vector<8x128xf32>
    %77 = arith.minimumf %62, %69 : vector<8x128xf32>
    %78 = arith.minimumf %77, %76 : vector<8x128xf32>
    %cst_0 = arith.constant 0.000000e+00 : f32
    %79 = vector.broadcast %cst_0 : f32 to vector<8x128xf32>
    %80 = arith.cmpf oge, %78, %79 : vector<8x128xf32>
    %81 = arith.ori %46, %80 : vector<8x128xi1>
    %c18 = arith.constant 18 : index
    %82 = memref.load %arg0[%c18] : memref<108xf32, #tpu.memory_space<smem>>
    %c19 = arith.constant 19 : index
    %83 = memref.load %arg0[%c19] : memref<108xf32, #tpu.memory_space<smem>>
    %c20 = arith.constant 20 : index
    %84 = memref.load %arg0[%c20] : memref<108xf32, #tpu.memory_space<smem>>
    %c21 = arith.constant 21 : index
    %85 = memref.load %arg0[%c21] : memref<108xf32, #tpu.memory_space<smem>>
    %c22 = arith.constant 22 : index
    %86 = memref.load %arg0[%c22] : memref<108xf32, #tpu.memory_space<smem>>
    %c23 = arith.constant 23 : index
    %87 = memref.load %arg0[%c23] : memref<108xf32, #tpu.memory_space<smem>>
    %c24 = arith.constant 24 : index
    %88 = memref.load %arg0[%c24] : memref<108xf32, #tpu.memory_space<smem>>
    %c25 = arith.constant 25 : index
    %89 = memref.load %arg0[%c25] : memref<108xf32, #tpu.memory_space<smem>>
    %c26 = arith.constant 26 : index
    %90 = memref.load %arg0[%c26] : memref<108xf32, #tpu.memory_space<smem>>
    %91 = vector.broadcast %82 : f32 to vector<8x128xf32>
    %92 = arith.mulf %91, %4 : vector<8x128xf32>
    %93 = vector.broadcast %83 : f32 to vector<8x128xf32>
    %94 = arith.mulf %93, %10 : vector<8x128xf32>
    %95 = arith.addf %92, %94 : vector<8x128xf32>
    %96 = vector.broadcast %84 : f32 to vector<8x128xf32>
    %97 = arith.addf %95, %96 : vector<8x128xf32>
    %98 = vector.broadcast %85 : f32 to vector<8x128xf32>
    %99 = arith.mulf %98, %4 : vector<8x128xf32>
    %100 = vector.broadcast %86 : f32 to vector<8x128xf32>
    %101 = arith.mulf %100, %10 : vector<8x128xf32>
    %102 = arith.addf %99, %101 : vector<8x128xf32>
    %103 = vector.broadcast %87 : f32 to vector<8x128xf32>
    %104 = arith.addf %102, %103 : vector<8x128xf32>
    %105 = vector.broadcast %88 : f32 to vector<8x128xf32>
    %106 = arith.mulf %105, %4 : vector<8x128xf32>
    %107 = vector.broadcast %89 : f32 to vector<8x128xf32>
    %108 = arith.mulf %107, %10 : vector<8x128xf32>
    %109 = arith.addf %106, %108 : vector<8x128xf32>
    %110 = vector.broadcast %90 : f32 to vector<8x128xf32>
    %111 = arith.addf %109, %110 : vector<8x128xf32>
    %112 = arith.minimumf %97, %104 : vector<8x128xf32>
    %113 = arith.minimumf %112, %111 : vector<8x128xf32>
    %cst_1 = arith.constant 0.000000e+00 : f32
    %114 = vector.broadcast %cst_1 : f32 to vector<8x128xf32>
    %115 = arith.cmpf oge, %113, %114 : vector<8x128xf32>
    %116 = arith.ori %81, %115 : vector<8x128xi1>
    %c27 = arith.constant 27 : index
    %117 = memref.load %arg0[%c27] : memref<108xf32, #tpu.memory_space<smem>>
    %c28 = arith.constant 28 : index
    %118 = memref.load %arg0[%c28] : memref<108xf32, #tpu.memory_space<smem>>
    %c29 = arith.constant 29 : index
    %119 = memref.load %arg0[%c29] : memref<108xf32, #tpu.memory_space<smem>>
    %c30 = arith.constant 30 : index
    %120 = memref.load %arg0[%c30] : memref<108xf32, #tpu.memory_space<smem>>
    %c31 = arith.constant 31 : index
    %121 = memref.load %arg0[%c31] : memref<108xf32, #tpu.memory_space<smem>>
    %c32 = arith.constant 32 : index
    %122 = memref.load %arg0[%c32] : memref<108xf32, #tpu.memory_space<smem>>
    %c33 = arith.constant 33 : index
    %123 = memref.load %arg0[%c33] : memref<108xf32, #tpu.memory_space<smem>>
    %c34 = arith.constant 34 : index
    %124 = memref.load %arg0[%c34] : memref<108xf32, #tpu.memory_space<smem>>
    %c35 = arith.constant 35 : index
    %125 = memref.load %arg0[%c35] : memref<108xf32, #tpu.memory_space<smem>>
    %126 = vector.broadcast %117 : f32 to vector<8x128xf32>
    %127 = arith.mulf %126, %4 : vector<8x128xf32>
    %128 = vector.broadcast %118 : f32 to vector<8x128xf32>
    %129 = arith.mulf %128, %10 : vector<8x128xf32>
    %130 = arith.addf %127, %129 : vector<8x128xf32>
    %131 = vector.broadcast %119 : f32 to vector<8x128xf32>
    %132 = arith.addf %130, %131 : vector<8x128xf32>
    %133 = vector.broadcast %120 : f32 to vector<8x128xf32>
    %134 = arith.mulf %133, %4 : vector<8x128xf32>
    %135 = vector.broadcast %121 : f32 to vector<8x128xf32>
    %136 = arith.mulf %135, %10 : vector<8x128xf32>
    %137 = arith.addf %134, %136 : vector<8x128xf32>
    %138 = vector.broadcast %122 : f32 to vector<8x128xf32>
    %139 = arith.addf %137, %138 : vector<8x128xf32>
    %140 = vector.broadcast %123 : f32 to vector<8x128xf32>
    %141 = arith.mulf %140, %4 : vector<8x128xf32>
    %142 = vector.broadcast %124 : f32 to vector<8x128xf32>
    %143 = arith.mulf %142, %10 : vector<8x128xf32>
    %144 = arith.addf %141, %143 : vector<8x128xf32>
    %145 = vector.broadcast %125 : f32 to vector<8x128xf32>
    %146 = arith.addf %144, %145 : vector<8x128xf32>
    %147 = arith.minimumf %132, %139 : vector<8x128xf32>
    %148 = arith.minimumf %147, %146 : vector<8x128xf32>
    %cst_2 = arith.constant 0.000000e+00 : f32
    %149 = vector.broadcast %cst_2 : f32 to vector<8x128xf32>
    %150 = arith.cmpf oge, %148, %149 : vector<8x128xf32>
    %151 = arith.ori %116, %150 : vector<8x128xi1>
    %c36 = arith.constant 36 : index
    %152 = memref.load %arg0[%c36] : memref<108xf32, #tpu.memory_space<smem>>
    %c37 = arith.constant 37 : index
    %153 = memref.load %arg0[%c37] : memref<108xf32, #tpu.memory_space<smem>>
    %c38 = arith.constant 38 : index
    %154 = memref.load %arg0[%c38] : memref<108xf32, #tpu.memory_space<smem>>
    %c39 = arith.constant 39 : index
    %155 = memref.load %arg0[%c39] : memref<108xf32, #tpu.memory_space<smem>>
    %c40 = arith.constant 40 : index
    %156 = memref.load %arg0[%c40] : memref<108xf32, #tpu.memory_space<smem>>
    %c41 = arith.constant 41 : index
    %157 = memref.load %arg0[%c41] : memref<108xf32, #tpu.memory_space<smem>>
    %c42 = arith.constant 42 : index
    %158 = memref.load %arg0[%c42] : memref<108xf32, #tpu.memory_space<smem>>
    %c43 = arith.constant 43 : index
    %159 = memref.load %arg0[%c43] : memref<108xf32, #tpu.memory_space<smem>>
    %c44 = arith.constant 44 : index
    %160 = memref.load %arg0[%c44] : memref<108xf32, #tpu.memory_space<smem>>
    %161 = vector.broadcast %152 : f32 to vector<8x128xf32>
    %162 = arith.mulf %161, %4 : vector<8x128xf32>
    %163 = vector.broadcast %153 : f32 to vector<8x128xf32>
    %164 = arith.mulf %163, %10 : vector<8x128xf32>
    %165 = arith.addf %162, %164 : vector<8x128xf32>
    %166 = vector.broadcast %154 : f32 to vector<8x128xf32>
    %167 = arith.addf %165, %166 : vector<8x128xf32>
    %168 = vector.broadcast %155 : f32 to vector<8x128xf32>
    %169 = arith.mulf %168, %4 : vector<8x128xf32>
    %170 = vector.broadcast %156 : f32 to vector<8x128xf32>
    %171 = arith.mulf %170, %10 : vector<8x128xf32>
    %172 = arith.addf %169, %171 : vector<8x128xf32>
    %173 = vector.broadcast %157 : f32 to vector<8x128xf32>
    %174 = arith.addf %172, %173 : vector<8x128xf32>
    %175 = vector.broadcast %158 : f32 to vector<8x128xf32>
    %176 = arith.mulf %175, %4 : vector<8x128xf32>
    %177 = vector.broadcast %159 : f32 to vector<8x128xf32>
    %178 = arith.mulf %177, %10 : vector<8x128xf32>
    %179 = arith.addf %176, %178 : vector<8x128xf32>
    %180 = vector.broadcast %160 : f32 to vector<8x128xf32>
    %181 = arith.addf %179, %180 : vector<8x128xf32>
    %182 = arith.minimumf %167, %174 : vector<8x128xf32>
    %183 = arith.minimumf %182, %181 : vector<8x128xf32>
    %cst_3 = arith.constant 0.000000e+00 : f32
    %184 = vector.broadcast %cst_3 : f32 to vector<8x128xf32>
    %185 = arith.cmpf oge, %183, %184 : vector<8x128xf32>
    %186 = arith.ori %151, %185 : vector<8x128xi1>
    %c45 = arith.constant 45 : index
    %187 = memref.load %arg0[%c45] : memref<108xf32, #tpu.memory_space<smem>>
    %c46 = arith.constant 46 : index
    %188 = memref.load %arg0[%c46] : memref<108xf32, #tpu.memory_space<smem>>
    %c47 = arith.constant 47 : index
    %189 = memref.load %arg0[%c47] : memref<108xf32, #tpu.memory_space<smem>>
    %c48 = arith.constant 48 : index
    %190 = memref.load %arg0[%c48] : memref<108xf32, #tpu.memory_space<smem>>
    %c49 = arith.constant 49 : index
    %191 = memref.load %arg0[%c49] : memref<108xf32, #tpu.memory_space<smem>>
    %c50 = arith.constant 50 : index
    %192 = memref.load %arg0[%c50] : memref<108xf32, #tpu.memory_space<smem>>
    %c51 = arith.constant 51 : index
    %193 = memref.load %arg0[%c51] : memref<108xf32, #tpu.memory_space<smem>>
    %c52 = arith.constant 52 : index
    %194 = memref.load %arg0[%c52] : memref<108xf32, #tpu.memory_space<smem>>
    %c53 = arith.constant 53 : index
    %195 = memref.load %arg0[%c53] : memref<108xf32, #tpu.memory_space<smem>>
    %196 = vector.broadcast %187 : f32 to vector<8x128xf32>
    %197 = arith.mulf %196, %4 : vector<8x128xf32>
    %198 = vector.broadcast %188 : f32 to vector<8x128xf32>
    %199 = arith.mulf %198, %10 : vector<8x128xf32>
    %200 = arith.addf %197, %199 : vector<8x128xf32>
    %201 = vector.broadcast %189 : f32 to vector<8x128xf32>
    %202 = arith.addf %200, %201 : vector<8x128xf32>
    %203 = vector.broadcast %190 : f32 to vector<8x128xf32>
    %204 = arith.mulf %203, %4 : vector<8x128xf32>
    %205 = vector.broadcast %191 : f32 to vector<8x128xf32>
    %206 = arith.mulf %205, %10 : vector<8x128xf32>
    %207 = arith.addf %204, %206 : vector<8x128xf32>
    %208 = vector.broadcast %192 : f32 to vector<8x128xf32>
    %209 = arith.addf %207, %208 : vector<8x128xf32>
    %210 = vector.broadcast %193 : f32 to vector<8x128xf32>
    %211 = arith.mulf %210, %4 : vector<8x128xf32>
    %212 = vector.broadcast %194 : f32 to vector<8x128xf32>
    %213 = arith.mulf %212, %10 : vector<8x128xf32>
    %214 = arith.addf %211, %213 : vector<8x128xf32>
    %215 = vector.broadcast %195 : f32 to vector<8x128xf32>
    %216 = arith.addf %214, %215 : vector<8x128xf32>
    %217 = arith.minimumf %202, %209 : vector<8x128xf32>
    %218 = arith.minimumf %217, %216 : vector<8x128xf32>
    %cst_4 = arith.constant 0.000000e+00 : f32
    %219 = vector.broadcast %cst_4 : f32 to vector<8x128xf32>
    %220 = arith.cmpf oge, %218, %219 : vector<8x128xf32>
    %221 = arith.ori %186, %220 : vector<8x128xi1>
    %c54 = arith.constant 54 : index
    %222 = memref.load %arg0[%c54] : memref<108xf32, #tpu.memory_space<smem>>
    %c55 = arith.constant 55 : index
    %223 = memref.load %arg0[%c55] : memref<108xf32, #tpu.memory_space<smem>>
    %c56 = arith.constant 56 : index
    %224 = memref.load %arg0[%c56] : memref<108xf32, #tpu.memory_space<smem>>
    %c57 = arith.constant 57 : index
    %225 = memref.load %arg0[%c57] : memref<108xf32, #tpu.memory_space<smem>>
    %c58 = arith.constant 58 : index
    %226 = memref.load %arg0[%c58] : memref<108xf32, #tpu.memory_space<smem>>
    %c59 = arith.constant 59 : index
    %227 = memref.load %arg0[%c59] : memref<108xf32, #tpu.memory_space<smem>>
    %c60 = arith.constant 60 : index
    %228 = memref.load %arg0[%c60] : memref<108xf32, #tpu.memory_space<smem>>
    %c61 = arith.constant 61 : index
    %229 = memref.load %arg0[%c61] : memref<108xf32, #tpu.memory_space<smem>>
    %c62 = arith.constant 62 : index
    %230 = memref.load %arg0[%c62] : memref<108xf32, #tpu.memory_space<smem>>
    %231 = vector.broadcast %222 : f32 to vector<8x128xf32>
    %232 = arith.mulf %231, %4 : vector<8x128xf32>
    %233 = vector.broadcast %223 : f32 to vector<8x128xf32>
    %234 = arith.mulf %233, %10 : vector<8x128xf32>
    %235 = arith.addf %232, %234 : vector<8x128xf32>
    %236 = vector.broadcast %224 : f32 to vector<8x128xf32>
    %237 = arith.addf %235, %236 : vector<8x128xf32>
    %238 = vector.broadcast %225 : f32 to vector<8x128xf32>
    %239 = arith.mulf %238, %4 : vector<8x128xf32>
    %240 = vector.broadcast %226 : f32 to vector<8x128xf32>
    %241 = arith.mulf %240, %10 : vector<8x128xf32>
    %242 = arith.addf %239, %241 : vector<8x128xf32>
    %243 = vector.broadcast %227 : f32 to vector<8x128xf32>
    %244 = arith.addf %242, %243 : vector<8x128xf32>
    %245 = vector.broadcast %228 : f32 to vector<8x128xf32>
    %246 = arith.mulf %245, %4 : vector<8x128xf32>
    %247 = vector.broadcast %229 : f32 to vector<8x128xf32>
    %248 = arith.mulf %247, %10 : vector<8x128xf32>
    %249 = arith.addf %246, %248 : vector<8x128xf32>
    %250 = vector.broadcast %230 : f32 to vector<8x128xf32>
    %251 = arith.addf %249, %250 : vector<8x128xf32>
    %252 = arith.minimumf %237, %244 : vector<8x128xf32>
    %253 = arith.minimumf %252, %251 : vector<8x128xf32>
    %cst_5 = arith.constant 0.000000e+00 : f32
    %254 = vector.broadcast %cst_5 : f32 to vector<8x128xf32>
    %255 = arith.cmpf oge, %253, %254 : vector<8x128xf32>
    %256 = arith.ori %221, %255 : vector<8x128xi1>
    %c63 = arith.constant 63 : index
    %257 = memref.load %arg0[%c63] : memref<108xf32, #tpu.memory_space<smem>>
    %c64 = arith.constant 64 : index
    %258 = memref.load %arg0[%c64] : memref<108xf32, #tpu.memory_space<smem>>
    %c65 = arith.constant 65 : index
    %259 = memref.load %arg0[%c65] : memref<108xf32, #tpu.memory_space<smem>>
    %c66 = arith.constant 66 : index
    %260 = memref.load %arg0[%c66] : memref<108xf32, #tpu.memory_space<smem>>
    %c67 = arith.constant 67 : index
    %261 = memref.load %arg0[%c67] : memref<108xf32, #tpu.memory_space<smem>>
    %c68 = arith.constant 68 : index
    %262 = memref.load %arg0[%c68] : memref<108xf32, #tpu.memory_space<smem>>
    %c69 = arith.constant 69 : index
    %263 = memref.load %arg0[%c69] : memref<108xf32, #tpu.memory_space<smem>>
    %c70 = arith.constant 70 : index
    %264 = memref.load %arg0[%c70] : memref<108xf32, #tpu.memory_space<smem>>
    %c71 = arith.constant 71 : index
    %265 = memref.load %arg0[%c71] : memref<108xf32, #tpu.memory_space<smem>>
    %266 = vector.broadcast %257 : f32 to vector<8x128xf32>
    %267 = arith.mulf %266, %4 : vector<8x128xf32>
    %268 = vector.broadcast %258 : f32 to vector<8x128xf32>
    %269 = arith.mulf %268, %10 : vector<8x128xf32>
    %270 = arith.addf %267, %269 : vector<8x128xf32>
    %271 = vector.broadcast %259 : f32 to vector<8x128xf32>
    %272 = arith.addf %270, %271 : vector<8x128xf32>
    %273 = vector.broadcast %260 : f32 to vector<8x128xf32>
    %274 = arith.mulf %273, %4 : vector<8x128xf32>
    %275 = vector.broadcast %261 : f32 to vector<8x128xf32>
    %276 = arith.mulf %275, %10 : vector<8x128xf32>
    %277 = arith.addf %274, %276 : vector<8x128xf32>
    %278 = vector.broadcast %262 : f32 to vector<8x128xf32>
    %279 = arith.addf %277, %278 : vector<8x128xf32>
    %280 = vector.broadcast %263 : f32 to vector<8x128xf32>
    %281 = arith.mulf %280, %4 : vector<8x128xf32>
    %282 = vector.broadcast %264 : f32 to vector<8x128xf32>
    %283 = arith.mulf %282, %10 : vector<8x128xf32>
    %284 = arith.addf %281, %283 : vector<8x128xf32>
    %285 = vector.broadcast %265 : f32 to vector<8x128xf32>
    %286 = arith.addf %284, %285 : vector<8x128xf32>
    %287 = arith.minimumf %272, %279 : vector<8x128xf32>
    %288 = arith.minimumf %287, %286 : vector<8x128xf32>
    %cst_6 = arith.constant 0.000000e+00 : f32
    %289 = vector.broadcast %cst_6 : f32 to vector<8x128xf32>
    %290 = arith.cmpf oge, %288, %289 : vector<8x128xf32>
    %291 = arith.ori %256, %290 : vector<8x128xi1>
    %c72 = arith.constant 72 : index
    %292 = memref.load %arg0[%c72] : memref<108xf32, #tpu.memory_space<smem>>
    %c73 = arith.constant 73 : index
    %293 = memref.load %arg0[%c73] : memref<108xf32, #tpu.memory_space<smem>>
    %c74 = arith.constant 74 : index
    %294 = memref.load %arg0[%c74] : memref<108xf32, #tpu.memory_space<smem>>
    %c75 = arith.constant 75 : index
    %295 = memref.load %arg0[%c75] : memref<108xf32, #tpu.memory_space<smem>>
    %c76 = arith.constant 76 : index
    %296 = memref.load %arg0[%c76] : memref<108xf32, #tpu.memory_space<smem>>
    %c77 = arith.constant 77 : index
    %297 = memref.load %arg0[%c77] : memref<108xf32, #tpu.memory_space<smem>>
    %c78 = arith.constant 78 : index
    %298 = memref.load %arg0[%c78] : memref<108xf32, #tpu.memory_space<smem>>
    %c79 = arith.constant 79 : index
    %299 = memref.load %arg0[%c79] : memref<108xf32, #tpu.memory_space<smem>>
    %c80 = arith.constant 80 : index
    %300 = memref.load %arg0[%c80] : memref<108xf32, #tpu.memory_space<smem>>
    %301 = vector.broadcast %292 : f32 to vector<8x128xf32>
    %302 = arith.mulf %301, %4 : vector<8x128xf32>
    %303 = vector.broadcast %293 : f32 to vector<8x128xf32>
    %304 = arith.mulf %303, %10 : vector<8x128xf32>
    %305 = arith.addf %302, %304 : vector<8x128xf32>
    %306 = vector.broadcast %294 : f32 to vector<8x128xf32>
    %307 = arith.addf %305, %306 : vector<8x128xf32>
    %308 = vector.broadcast %295 : f32 to vector<8x128xf32>
    %309 = arith.mulf %308, %4 : vector<8x128xf32>
    %310 = vector.broadcast %296 : f32 to vector<8x128xf32>
    %311 = arith.mulf %310, %10 : vector<8x128xf32>
    %312 = arith.addf %309, %311 : vector<8x128xf32>
    %313 = vector.broadcast %297 : f32 to vector<8x128xf32>
    %314 = arith.addf %312, %313 : vector<8x128xf32>
    %315 = vector.broadcast %298 : f32 to vector<8x128xf32>
    %316 = arith.mulf %315, %4 : vector<8x128xf32>
    %317 = vector.broadcast %299 : f32 to vector<8x128xf32>
    %318 = arith.mulf %317, %10 : vector<8x128xf32>
    %319 = arith.addf %316, %318 : vector<8x128xf32>
    %320 = vector.broadcast %300 : f32 to vector<8x128xf32>
    %321 = arith.addf %319, %320 : vector<8x128xf32>
    %322 = arith.minimumf %307, %314 : vector<8x128xf32>
    %323 = arith.minimumf %322, %321 : vector<8x128xf32>
    %cst_7 = arith.constant 0.000000e+00 : f32
    %324 = vector.broadcast %cst_7 : f32 to vector<8x128xf32>
    %325 = arith.cmpf oge, %323, %324 : vector<8x128xf32>
    %326 = arith.ori %291, %325 : vector<8x128xi1>
    %c81 = arith.constant 81 : index
    %327 = memref.load %arg0[%c81] : memref<108xf32, #tpu.memory_space<smem>>
    %c82 = arith.constant 82 : index
    %328 = memref.load %arg0[%c82] : memref<108xf32, #tpu.memory_space<smem>>
    %c83 = arith.constant 83 : index
    %329 = memref.load %arg0[%c83] : memref<108xf32, #tpu.memory_space<smem>>
    %c84 = arith.constant 84 : index
    %330 = memref.load %arg0[%c84] : memref<108xf32, #tpu.memory_space<smem>>
    %c85 = arith.constant 85 : index
    %331 = memref.load %arg0[%c85] : memref<108xf32, #tpu.memory_space<smem>>
    %c86 = arith.constant 86 : index
    %332 = memref.load %arg0[%c86] : memref<108xf32, #tpu.memory_space<smem>>
    %c87 = arith.constant 87 : index
    %333 = memref.load %arg0[%c87] : memref<108xf32, #tpu.memory_space<smem>>
    %c88 = arith.constant 88 : index
    %334 = memref.load %arg0[%c88] : memref<108xf32, #tpu.memory_space<smem>>
    %c89 = arith.constant 89 : index
    %335 = memref.load %arg0[%c89] : memref<108xf32, #tpu.memory_space<smem>>
    %336 = vector.broadcast %327 : f32 to vector<8x128xf32>
    %337 = arith.mulf %336, %4 : vector<8x128xf32>
    %338 = vector.broadcast %328 : f32 to vector<8x128xf32>
    %339 = arith.mulf %338, %10 : vector<8x128xf32>
    %340 = arith.addf %337, %339 : vector<8x128xf32>
    %341 = vector.broadcast %329 : f32 to vector<8x128xf32>
    %342 = arith.addf %340, %341 : vector<8x128xf32>
    %343 = vector.broadcast %330 : f32 to vector<8x128xf32>
    %344 = arith.mulf %343, %4 : vector<8x128xf32>
    %345 = vector.broadcast %331 : f32 to vector<8x128xf32>
    %346 = arith.mulf %345, %10 : vector<8x128xf32>
    %347 = arith.addf %344, %346 : vector<8x128xf32>
    %348 = vector.broadcast %332 : f32 to vector<8x128xf32>
    %349 = arith.addf %347, %348 : vector<8x128xf32>
    %350 = vector.broadcast %333 : f32 to vector<8x128xf32>
    %351 = arith.mulf %350, %4 : vector<8x128xf32>
    %352 = vector.broadcast %334 : f32 to vector<8x128xf32>
    %353 = arith.mulf %352, %10 : vector<8x128xf32>
    %354 = arith.addf %351, %353 : vector<8x128xf32>
    %355 = vector.broadcast %335 : f32 to vector<8x128xf32>
    %356 = arith.addf %354, %355 : vector<8x128xf32>
    %357 = arith.minimumf %342, %349 : vector<8x128xf32>
    %358 = arith.minimumf %357, %356 : vector<8x128xf32>
    %cst_8 = arith.constant 0.000000e+00 : f32
    %359 = vector.broadcast %cst_8 : f32 to vector<8x128xf32>
    %360 = arith.cmpf oge, %358, %359 : vector<8x128xf32>
    %361 = arith.ori %326, %360 : vector<8x128xi1>
    %c90 = arith.constant 90 : index
    %362 = memref.load %arg0[%c90] : memref<108xf32, #tpu.memory_space<smem>>
    %c91 = arith.constant 91 : index
    %363 = memref.load %arg0[%c91] : memref<108xf32, #tpu.memory_space<smem>>
    %c92 = arith.constant 92 : index
    %364 = memref.load %arg0[%c92] : memref<108xf32, #tpu.memory_space<smem>>
    %c93 = arith.constant 93 : index
    %365 = memref.load %arg0[%c93] : memref<108xf32, #tpu.memory_space<smem>>
    %c94 = arith.constant 94 : index
    %366 = memref.load %arg0[%c94] : memref<108xf32, #tpu.memory_space<smem>>
    %c95 = arith.constant 95 : index
    %367 = memref.load %arg0[%c95] : memref<108xf32, #tpu.memory_space<smem>>
    %c96 = arith.constant 96 : index
    %368 = memref.load %arg0[%c96] : memref<108xf32, #tpu.memory_space<smem>>
    %c97 = arith.constant 97 : index
    %369 = memref.load %arg0[%c97] : memref<108xf32, #tpu.memory_space<smem>>
    %c98 = arith.constant 98 : index
    %370 = memref.load %arg0[%c98] : memref<108xf32, #tpu.memory_space<smem>>
    %371 = vector.broadcast %362 : f32 to vector<8x128xf32>
    %372 = arith.mulf %371, %4 : vector<8x128xf32>
    %373 = vector.broadcast %363 : f32 to vector<8x128xf32>
    %374 = arith.mulf %373, %10 : vector<8x128xf32>
    %375 = arith.addf %372, %374 : vector<8x128xf32>
    %376 = vector.broadcast %364 : f32 to vector<8x128xf32>
    %377 = arith.addf %375, %376 : vector<8x128xf32>
    %378 = vector.broadcast %365 : f32 to vector<8x128xf32>
    %379 = arith.mulf %378, %4 : vector<8x128xf32>
    %380 = vector.broadcast %366 : f32 to vector<8x128xf32>
    %381 = arith.mulf %380, %10 : vector<8x128xf32>
    %382 = arith.addf %379, %381 : vector<8x128xf32>
    %383 = vector.broadcast %367 : f32 to vector<8x128xf32>
    %384 = arith.addf %382, %383 : vector<8x128xf32>
    %385 = vector.broadcast %368 : f32 to vector<8x128xf32>
    %386 = arith.mulf %385, %4 : vector<8x128xf32>
    %387 = vector.broadcast %369 : f32 to vector<8x128xf32>
    %388 = arith.mulf %387, %10 : vector<8x128xf32>
    %389 = arith.addf %386, %388 : vector<8x128xf32>
    %390 = vector.broadcast %370 : f32 to vector<8x128xf32>
    %391 = arith.addf %389, %390 : vector<8x128xf32>
    %392 = arith.minimumf %377, %384 : vector<8x128xf32>
    %393 = arith.minimumf %392, %391 : vector<8x128xf32>
    %cst_9 = arith.constant 0.000000e+00 : f32
    %394 = vector.broadcast %cst_9 : f32 to vector<8x128xf32>
    %395 = arith.cmpf oge, %393, %394 : vector<8x128xf32>
    %396 = arith.ori %361, %395 : vector<8x128xi1>
    %c99 = arith.constant 99 : index
    %397 = memref.load %arg0[%c99] : memref<108xf32, #tpu.memory_space<smem>>
    %c100 = arith.constant 100 : index
    %398 = memref.load %arg0[%c100] : memref<108xf32, #tpu.memory_space<smem>>
    %c101 = arith.constant 101 : index
    %399 = memref.load %arg0[%c101] : memref<108xf32, #tpu.memory_space<smem>>
    %c102 = arith.constant 102 : index
    %400 = memref.load %arg0[%c102] : memref<108xf32, #tpu.memory_space<smem>>
    %c103 = arith.constant 103 : index
    %401 = memref.load %arg0[%c103] : memref<108xf32, #tpu.memory_space<smem>>
    %c104 = arith.constant 104 : index
    %402 = memref.load %arg0[%c104] : memref<108xf32, #tpu.memory_space<smem>>
    %c105 = arith.constant 105 : index
    %403 = memref.load %arg0[%c105] : memref<108xf32, #tpu.memory_space<smem>>
    %c106 = arith.constant 106 : index
    %404 = memref.load %arg0[%c106] : memref<108xf32, #tpu.memory_space<smem>>
    %c107 = arith.constant 107 : index
    %405 = memref.load %arg0[%c107] : memref<108xf32, #tpu.memory_space<smem>>
    %406 = vector.broadcast %397 : f32 to vector<8x128xf32>
    %407 = arith.mulf %406, %4 : vector<8x128xf32>
    %408 = vector.broadcast %398 : f32 to vector<8x128xf32>
    %409 = arith.mulf %408, %10 : vector<8x128xf32>
    %410 = arith.addf %407, %409 : vector<8x128xf32>
    %411 = vector.broadcast %399 : f32 to vector<8x128xf32>
    %412 = arith.addf %410, %411 : vector<8x128xf32>
    %413 = vector.broadcast %400 : f32 to vector<8x128xf32>
    %414 = arith.mulf %413, %4 : vector<8x128xf32>
    %415 = vector.broadcast %401 : f32 to vector<8x128xf32>
    %416 = arith.mulf %415, %10 : vector<8x128xf32>
    %417 = arith.addf %414, %416 : vector<8x128xf32>
    %418 = vector.broadcast %402 : f32 to vector<8x128xf32>
    %419 = arith.addf %417, %418 : vector<8x128xf32>
    %420 = vector.broadcast %403 : f32 to vector<8x128xf32>
    %421 = arith.mulf %420, %4 : vector<8x128xf32>
    %422 = vector.broadcast %404 : f32 to vector<8x128xf32>
    %423 = arith.mulf %422, %10 : vector<8x128xf32>
    %424 = arith.addf %421, %423 : vector<8x128xf32>
    %425 = vector.broadcast %405 : f32 to vector<8x128xf32>
    %426 = arith.addf %424, %425 : vector<8x128xf32>
    %427 = arith.minimumf %412, %419 : vector<8x128xf32>
    %428 = arith.minimumf %427, %426 : vector<8x128xf32>
    %cst_10 = arith.constant 0.000000e+00 : f32
    %429 = vector.broadcast %cst_10 : f32 to vector<8x128xf32>
    %430 = arith.cmpf oge, %428, %429 : vector<8x128xf32>
    %431 = arith.ori %396, %430 : vector<8x128xi1>
    %432 = arith.extui %431 : vector<8x128xi1> to vector<8x128xi32>
    %433 = arith.sitofp %432 : vector<8x128xi32> to vector<8x128xf32>
    %c0_11 = arith.constant 0 : index
    %c0_12 = arith.constant 0 : index
    %434 = vector.load %arg3[%c0_11, %c0_12] : memref<8x128xf32, #tpu.memory_space<vmem>>, vector<8x128xf32>
    tpu.vector_store %arg3[%c0_11, %c0_12], %433 {strides = array<i32>} : memref<8x128xf32, #tpu.memory_space<vmem>>, vector<8x128xf32>,
    %c0_13 = arith.constant 0 : index
    %c0_14 = arith.constant 0 : index
    %435 = vector.load %arg1[%c0_13, %c0_14] : memref<8x128xf32, #tpu.memory_space<vmem>>, vector<8x128xf32>
    %436 = arith.subf %433, %435 : vector<8x128xf32>
    %437 = arith.mulf %436, %436 : vector<8x128xf32>
    %438 = vector.shape_cast %437 : vector<8x128xf32> to vector<1x8x128xf32>
    %cst_15 = arith.constant dense<0.000000e+00> : vector<1xf32>
    %439 = vector.multi_reduction <add>, %438, %cst_15 [1, 2] : vector<1x8x128xf32> to vector<1xf32>
    %440 = vector.shape_cast %439 : vector<1xf32> to vector<1x1x1xf32>
    %441 = vector.extract %440[0, 0, 0] : f32 from vector<1x1x1xf32>
    %c0_16 = arith.constant 0 : index
    %c0_17 = arith.constant 0 : index
    %442 = memref.load %arg2[%c0_16, %c0_17] : memref<1x1xf32, #tpu.memory_space<smem>>
    memref.store %441, %arg2[%c0_16, %c0_17] : memref<1x1xf32, #tpu.memory_space<smem>>
    return
  }
}

</mosaic_0001>

<llo_original>
// kernel: model_morphing_forward.1
$region0: #{model_morphing_forward.1}
  #allocation0 [shape = 'u32[]', space=smem, size = 0x4, offset = 0x4, fixed_abs, tag = 'smem constant byte address 0x4 - core index']
  #allocation1 [shape = 'u32[72,128]{1,0:T(1,128)}', space=vmem, size = 0x9000, scoped, tag = 'internal scratch']
  %s0 = inlined_call_operand.vmem [shape: f32[108], index: 0, kind: input, shape index: {}]
  %s1 = inlined_call_operand.vmem [shape: f32[8,128], index: 1, kind: input, shape index: {}]
  %s2 = inlined_call_operand.hbm [shape: f32[1,1], index: 2, kind: output, shape index: {0}]
  %s3 = inlined_call_operand.vmem [shape: f32[8,128], index: 3, kind: output, shape index: {1}]
  %4 = xla_tuple %s2, %s3
  %s5 = sld [smem:[#allocation0]]
  $region30: #{model_morphing_forward.1} parent=0
    _
  %s7 = ssub.s32 1, %s5
  %s8 = scalar_select 0, %s7, %s5
  $region1: #{model_morphing_forward.1} parent=0
    #allocation2 [shape = 'u8[512]{0}', space=smem, size = 0x200, scoped, tag = 'input window, operand 0, single buffered']
    #allocation3 [shape = 's32[1]{0}', space=sflag, size = 0x4, scoped, tag = 'scoped memory for model_morphing_forward.1']
    #allocation4 [shape = 's32[1]{0}', space=sflag, size = 0x4, scoped, tag = 'scoped memory for model_morphing_forward.1']
    #allocation5 [shape = 'u8[512]{0}', space=smem, size = 0x200, scoped, tag = 'output window, operand 0, single buffered']
    %9 = vsyncpa [#allocation4], 0
    %10 = vsyncpa [#allocation3], 0
    // Predicated region
    $region2: #{model_morphing_forward.1} parent=1 // pred_check
      _
    $region3: #{model_morphing_forward.1} parent=1 // pred_check_branch
      %12 = sbr.rel (0) target = $region5
    $region4: #{model_morphing_forward.1} parent=1 // pred_region
      %14 = vsyncadd [#allocation4], 0
      %s16 = sshll.u32 %s0, 4
      %s17 = int_to_ptr.vmem [resolvable:$true] %s16
      %19 = dma.vmem_to_smem %s17, 16, [#allocation2], [#allocation4]
    $region5: #{model_morphing_forward.1} parent=1 // pred_fallthru
      _
    // Predicated region
    $region6: #{model_morphing_forward.1} parent=1 // pred_check
      _
    $region7: #{model_morphing_forward.1} parent=1 // pred_check_branch
      %21 = sbr.rel (0) target = $region9
    $region8: #{model_morphing_forward.1} parent=1 // pred_region
      _
    $region9: #{model_morphing_forward.1} parent=1 // pred_fallthru
      _
    // Predicated region
    $region10: #{model_morphing_forward.1} parent=1 // pred_check
      _
    $region11: #{model_morphing_forward.1} parent=1 // pred_check_branch
      %23 = sbr.rel (0) target = $region13
    $region12: #{model_morphing_forward.1} parent=1 // pred_region
      %25 = dma.done [#allocation4], 16
    $region13: #{model_morphing_forward.1} parent=1 // pred_fallthru
      _
    %26 = sfence
    %v27 = vlaneseq
    %v28 = vand.u32 %v27, 127
    %v29 = vlaneseq
    %v30 = vshrl.u32 %v29, 7
    %v31 = vand.u32 %v28, 31
    %v32 = vcvt.s32.f32 %v31
    %v33 = vmul.u32 %v30, 4
    %v34 = vshra.s32 %v28, 5
    %v35 = vadd.s32 %v33, %v34
    %v36 = vcvt.s32.f32 %v35
    %s37 = sld [smem:[#allocation2]]
    %s38 = sld [smem:[#allocation2 + $0x1]]
    %s39 = sld [smem:[#allocation2 + $0x2]]
    %s40 = sld [smem:[#allocation2 + $0x3]]
    %s41 = sld [smem:[#allocation2 + $0x4]]
    %s42 = sld [smem:[#allocation2 + $0x5]]
    %s43 = sld [smem:[#allocation2 + $0x6]]
    %s44 = sld [smem:[#allocation2 + $0x7]]
    %s45 = sld [smem:[#allocation2 + $0x8]]
    %v46 = vstv %s37
    %v47 = vmul.f32 %v46, %v32
    %v48 = vstv %s38
    %v49 = vmul.f32 %v48, %v36
    %v50 = vadd.f32 %v47, %v49
    %v51 = vstv %s39
    %v52 = vadd.f32 %v50, %v51
    %v53 = vstv %s40
    %v54 = vmul.f32 %v53, %v32
    %v55 = vstv %s41
    %v56 = vmul.f32 %v55, %v36
    %v57 = vadd.f32 %v54, %v56
    %v58 = vstv %s42
    %v59 = vadd.f32 %v57, %v58
    %v60 = vstv %s43
    %v61 = vmul.f32 %v60, %v32
    %v62 = vstv %s44
    %v63 = vmul.f32 %v62, %v36
    %v64 = vadd.f32 %v61, %v63
    %v65 = vstv %s45
    %v66 = vadd.f32 %v64, %v65
    %v67 = vmin.f32 %v52, %v59
    %v68 = vmin.f32 %v67, %v66
    %vm69 = vcmp.ge.f32.partialorder %v68, 0.0
    %s70 = sld [smem:[#allocation2 + $0x9]]
    %s71 = sld [smem:[#allocation2 + $0xa]]
    %s72 = sld [smem:[#allocation2 + $0xb]]
    %s73 = sld [smem:[#allocation2 + $0xc]]
    %s74 = sld [smem:[#allocation2 + $0xd]]
    %s75 = sld [smem:[#allocation2 + $0xe]]
    %s76 = sld [smem:[#allocation2 + $0xf]]
    %s77 = sld [smem:[#allocation2 + $0x10]]
    %s78 = sld [smem:[#allocation2 + $0x11]]
    %v79 = vstv %s70
    %v80 = vmul.f32 %v79, %v32
    %v81 = vstv %s71
    %v82 = vmul.f32 %v81, %v36
    %v83 = vadd.f32 %v80, %v82
    %v84 = vstv %s72
    %v85 = vadd.f32 %v83, %v84
    %v86 = vstv %s73
    %v87 = vmul.f32 %v86, %v32
    %v88 = vstv %s74
    %v89 = vmul.f32 %v88, %v36
    %v90 = vadd.f32 %v87, %v89
    %v91 = vstv %s75
    %v92 = vadd.f32 %v90, %v91
    %v93 = vstv %s76
    %v94 = vmul.f32 %v93, %v32
    %v95 = vstv %s77
    %v96 = vmul.f32 %v95, %v36
    %v97 = vadd.f32 %v94, %v96
    %v98 = vstv %s78
    %v99 = vadd.f32 %v97, %v98
    %v100 = vmin.f32 %v85, %v92
    %v101 = vmin.f32 %v100, %v99
    %vm102 = vcmp.ge.f32.partialorder %v101, 0.0
    %vm103 = vmor %vm69, %vm102
    %s104 = sld [smem:[#allocation2 + $0x12]]
    %s105 = sld [smem:[#allocation2 + $0x13]]
    %s106 = sld [smem:[#allocation2 + $0x14]]
    %s107 = sld [smem:[#allocation2 + $0x15]]
    %s108 = sld [smem:[#allocation2 + $0x16]]
    %s109 = sld [smem:[#allocation2 + $0x17]]
    %s110 = sld [smem:[#allocation2 + $0x18]]
    %s111 = sld [smem:[#allocation2 + $0x19]]
    %s112 = sld [smem:[#allocation2 + $0x1a]]
    %v113 = vstv %s104
    %v114 = vmul.f32 %v113, %v32
    %v115 = vstv %s105
    %v116 = vmul.f32 %v115, %v36
    %v117 = vadd.f32 %v114, %v116
    %v118 = vstv %s106
    %v119 = vadd.f32 %v117, %v118
    %v120 = vstv %s107
    %v121 = vmul.f32 %v120, %v32
    %v122 = vstv %s108
    %v123 = vmul.f32 %v122, %v36
    %v124 = vadd.f32 %v121, %v123
    %v125 = vstv %s109
    %v126 = vadd.f32 %v124, %v125
    %v127 = vstv %s110
    %v128 = vmul.f32 %v127, %v32
    %v129 = vstv %s111
    %v130 = vmul.f32 %v129, %v36
    %v131 = vadd.f32 %v128, %v130
    %v132 = vstv %s112
    %v133 = vadd.f32 %v131, %v132
    %v134 = vmin.f32 %v119, %v126
    %v135 = vmin.f32 %v134, %v133
    %vm136 = vcmp.ge.f32.partialorder %v135, 0.0
    %vm137 = vmor %vm103, %vm136
    %s138 = sld [smem:[#allocation2 + $0x1b]]
    %s139 = sld [smem:[#allocation2 + $0x1c]]
    %s140 = sld [smem:[#allocation2 + $0x1d]]
    %s141 = sld [smem:[#allocation2 + $0x1e]]
    %s142 = sld [smem:[#allocation2 + $0x1f]]
    %s143 = sld [smem:[#allocation2 + $0x20]]
    %s144 = sld [smem:[#allocation2 + $0x21]]
    %s145 = sld [smem:[#allocation2 + $0x22]]
    %s146 = sld [smem:[#allocation2 + $0x23]]
    %v147 = vstv %s138
    %v148 = vmul.f32 %v147, %v32
    %v149 = vstv %s139
    %v150 = vmul.f32 %v149, %v36
    %v151 = vadd.f32 %v148, %v150
    %v152 = vstv %s140
    %v153 = vadd.f32 %v151, %v152
    %v154 = vstv %s141
    %v155 = vmul.f32 %v154, %v32
    %v156 = vstv %s142
    %v157 = vmul.f32 %v156, %v36
    %v158 = vadd.f32 %v155, %v157
    %v159 = vstv %s143
    %v160 = vadd.f32 %v158, %v159
    %v161 = vstv %s144
    %v162 = vmul.f32 %v161, %v32
    %v163 = vstv %s145
    %v164 = vmul.f32 %v163, %v36
    %v165 = vadd.f32 %v162, %v164
    %v166 = vstv %s146
    %v167 = vadd.f32 %v165, %v166
    %v168 = vmin.f32 %v153, %v160
    %v169 = vmin.f32 %v168, %v167
    %vm170 = vcmp.ge.f32.partialorder %v169, 0.0
    %vm171 = vmor %vm137, %vm170
    %s172 = sld [smem:[#allocation2 + $0x24]]
    %s173 = sld [smem:[#allocation2 + $0x25]]
    %s174 = sld [smem:[#allocation2 + $0x26]]
    %s175 = sld [smem:[#allocation2 + $0x27]]
    %s176 = sld [smem:[#allocation2 + $0x28]]
    %s177 = sld [smem:[#allocation2 + $0x29]]
    %s178 = sld [smem:[#allocation2 + $0x2a]]
    %s179 = sld [smem:[#allocation2 + $0x2b]]
    %s180 = sld [smem:[#allocation2 + $0x2c]]
    %v181 = vstv %s172
    %v182 = vmul.f32 %v181, %v32
    %v183 = vstv %s173
    %v184 = vmul.f32 %v183, %v36
    %v185 = vadd.f32 %v182, %v184
    %v186 = vstv %s174
    %v187 = vadd.f32 %v185, %v186
    %v188 = vstv %s175
    %v189 = vmul.f32 %v188, %v32
    %v190 = vstv %s176
    %v191 = vmul.f32 %v190, %v36
    %v192 = vadd.f32 %v189, %v191
    %v193 = vstv %s177
    %v194 = vadd.f32 %v192, %v193
    %v195 = vstv %s178
    %v196 = vmul.f32 %v195, %v32
    %v197 = vstv %s179
    %v198 = vmul.f32 %v197, %v36
    %v199 = vadd.f32 %v196, %v198
    %v200 = vstv %s180
    %v201 = vadd.f32 %v199, %v200
    %v202 = vmin.f32 %v187, %v194
    %v203 = vmin.f32 %v202, %v201
    %vm204 = vcmp.ge.f32.partialorder %v203, 0.0
    %vm205 = vmor %vm171, %vm204
    %s206 = sld [smem:[#allocation2 + $0x2d]]
    %s207 = sld [smem:[#allocation2 + $0x2e]]
    %s208 = sld [smem:[#allocation2 + $0x2f]]
    %s209 = sld [smem:[#allocation2 + $0x30]]
    %s210 = sld [smem:[#allocation2 + $0x31]]
    %s211 = sld [smem:[#allocation2 + $0x32]]
    %s212 = sld [smem:[#allocation2 + $0x33]]
    %s213 = sld [smem:[#allocation2 + $0x34]]
    %s214 = sld [smem:[#allocation2 + $0x35]]
    %v215 = vstv %s206
    %v216 = vmul.f32 %v215, %v32
    %v217 = vstv %s207
    %v218 = vmul.f32 %v217, %v36
    %v219 = vadd.f32 %v216, %v218
    %v220 = vstv %s208
    %v221 = vadd.f32 %v219, %v220
    %v222 = vstv %s209
    %v223 = vmul.f32 %v222, %v32
    %v224 = vstv %s210
    %v225 = vmul.f32 %v224, %v36
    %v226 = vadd.f32 %v223, %v225
    %v227 = vstv %s211
    %v228 = vadd.f32 %v226, %v227
    %v229 = vstv %s212
    %v230 = vmul.f32 %v229, %v32
    %v231 = vstv %s213
    %v232 = vmul.f32 %v231, %v36
    %v233 = vadd.f32 %v230, %v232
    %v234 = vstv %s214
    %v235 = vadd.f32 %v233, %v234
    %v236 = vmin.f32 %v221, %v228
    %v237 = vmin.f32 %v236, %v235
    %vm238 = vcmp.ge.f32.partialorder %v237, 0.0
    %vm239 = vmor %vm205, %vm238
    %s240 = sld [smem:[#allocation2 + $0x36]]
    %s241 = sld [smem:[#allocation2 + $0x37]]
    %s242 = sld [smem:[#allocation2 + $0x38]]
    %s243 = sld [smem:[#allocation2 + $0x39]]
    %s244 = sld [smem:[#allocation2 + $0x3a]]
    %s245 = sld [smem:[#allocation2 + $0x3b]]
    %s246 = sld [smem:[#allocation2 + $0x3c]]
    %s247 = sld [smem:[#allocation2 + $0x3d]]
    %s248 = sld [smem:[#allocation2 + $0x3e]]
    %v249 = vstv %s240
    %v250 = vmul.f32 %v249, %v32
    %v251 = vstv %s241
    %v252 = vmul.f32 %v251, %v36
    %v253 = vadd.f32 %v250, %v252
    %v254 = vstv %s242
    %v255 = vadd.f32 %v253, %v254
    %v256 = vstv %s243
    %v257 = vmul.f32 %v256, %v32
    %v258 = vstv %s244
    %v259 = vmul.f32 %v258, %v36
    %v260 = vadd.f32 %v257, %v259
    %v261 = vstv %s245
    %v262 = vadd.f32 %v260, %v261
    %v263 = vstv %s246
    %v264 = vmul.f32 %v263, %v32
    %v265 = vstv %s247
    %v266 = vmul.f32 %v265, %v36
    %v267 = vadd.f32 %v264, %v266
    %v268 = vstv %s248
    %v269 = vadd.f32 %v267, %v268
    %v270 = vmin.f32 %v255, %v262
    %v271 = vmin.f32 %v270, %v269
    %vm272 = vcmp.ge.f32.partialorder %v271, 0.0
    %vm273 = vmor %vm239, %vm272
    %s274 = sld [smem:[#allocation2 + $0x3f]]
    %s275 = sld [smem:[#allocation2 + $0x40]]
    %s276 = sld [smem:[#allocation2 + $0x41]]
    %s277 = sld [smem:[#allocation2 + $0x42]]
    %s278 = sld [smem:[#allocation2 + $0x43]]
    %s279 = sld [smem:[#allocation2 + $0x44]]
    %s280 = sld [smem:[#allocation2 + $0x45]]
    %s281 = sld [smem:[#allocation2 + $0x46]]
    %s282 = sld [smem:[#allocation2 + $0x47]]
    %v283 = vstv %s274
    %v284 = vmul.f32 %v283, %v32
    %v285 = vstv %s275
    %v286 = vmul.f32 %v285, %v36
    %v287 = vadd.f32 %v284, %v286
    %v288 = vstv %s276
    %v289 = vadd.f32 %v287, %v288
    %v290 = vstv %s277
    %v291 = vmul.f32 %v290, %v32
    %v292 = vstv %s278
    %v293 = vmul.f32 %v292, %v36
    %v294 = vadd.f32 %v291, %v293
    %v295 = vstv %s279
    %v296 = vadd.f32 %v294, %v295
    %v297 = vstv %s280
    %v298 = vmul.f32 %v297, %v32
    %v299 = vstv %s281
    %v300 = vmul.f32 %v299, %v36
    %v301 = vadd.f32 %v298, %v300
    %v302 = vstv %s282
    %v303 = vadd.f32 %v301, %v302
    %v304 = vmin.f32 %v289, %v296
    %v305 = vmin.f32 %v304, %v303
    %vm306 = vcmp.ge.f32.partialorder %v305, 0.0
    %vm307 = vmor %vm273, %vm306
    %s308 = sld [smem:[#allocation2 + $0x48]]
    %s309 = sld [smem:[#allocation2 + $0x49]]
    %s310 = sld [smem:[#allocation2 + $0x4a]]
    %s311 = sld [smem:[#allocation2 + $0x4b]]
    %s312 = sld [smem:[#allocation2 + $0x4c]]
    %s313 = sld [smem:[#allocation2 + $0x4d]]
    %s314 = sld [smem:[#allocation2 + $0x4e]]
    %s315 = sld [smem:[#allocation2 + $0x4f]]
    %s316 = sld [smem:[#allocation2 + $0x50]]
    %v317 = vstv %s308
    %v318 = vmul.f32 %v317, %v32
    %v319 = vstv %s309
    %v320 = vmul.f32 %v319, %v36
    %v321 = vadd.f32 %v318, %v320
    %v322 = vstv %s310
    %v323 = vadd.f32 %v321, %v322
    %v324 = vstv %s311
    %v325 = vmul.f32 %v324, %v32
    %v326 = vstv %s312
    %v327 = vmul.f32 %v326, %v36
    %v328 = vadd.f32 %v325, %v327
    %v329 = vstv %s313
    %v330 = vadd.f32 %v328, %v329
    %v331 = vstv %s314
    %v332 = vmul.f32 %v331, %v32
    %v333 = vstv %s315
    %v334 = vmul.f32 %v333, %v36
    %v335 = vadd.f32 %v332, %v334
    %v336 = vstv %s316
    %v337 = vadd.f32 %v335, %v336
    %v338 = vmin.f32 %v323, %v330
    %v339 = vmin.f32 %v338, %v337
    %vm340 = vcmp.ge.f32.partialorder %v339, 0.0
    %vm341 = vmor %vm307, %vm340
    %s342 = sld [smem:[#allocation2 + $0x51]]
    %s343 = sld [smem:[#allocation2 + $0x52]]
    %s344 = sld [smem:[#allocation2 + $0x53]]
    %s345 = sld [smem:[#allocation2 + $0x54]]
    %s346 = sld [smem:[#allocation2 + $0x55]]
    %s347 = sld [smem:[#allocation2 + $0x56]]
    %s348 = sld [smem:[#allocation2 + $0x57]]
    %s349 = sld [smem:[#allocation2 + $0x58]]
    %s350 = sld [smem:[#allocation2 + $0x59]]
    %v351 = vstv %s342
    %v352 = vmul.f32 %v351, %v32
    %v353 = vstv %s343
    %v354 = vmul.f32 %v353, %v36
    %v355 = vadd.f32 %v352, %v354
    %v356 = vstv %s344
    %v357 = vadd.f32 %v355, %v356
    %v358 = vstv %s345
    %v359 = vmul.f32 %v358, %v32
    %v360 = vstv %s346
    %v361 = vmul.f32 %v360, %v36
    %v362 = vadd.f32 %v359, %v361
    %v363 = vstv %s347
    %v364 = vadd.f32 %v362, %v363
    %v365 = vstv %s348
    %v366 = vmul.f32 %v365, %v32
    %v367 = vstv %s349
    %v368 = vmul.f32 %v367, %v36
    %v369 = vadd.f32 %v366, %v368
    %v370 = vstv %s350
    %v371 = vadd.f32 %v369, %v370
    %v372 = vmin.f32 %v357, %v364
    %v373 = vmin.f32 %v372, %v371
    %vm374 = vcmp.ge.f32.partialorder %v373, 0.0
    %vm375 = vmor %vm341, %vm374
    %s376 = sld [smem:[#allocation2 + $0x5a]]
    %s377 = sld [smem:[#allocation2 + $0x5b]]
    %s378 = sld [smem:[#allocation2 + $0x5c]]
    %s379 = sld [smem:[#allocation2 + $0x5d]]
    %s380 = sld [smem:[#allocation2 + $0x5e]]
    %s381 = sld [smem:[#allocation2 + $0x5f]]
    %s382 = sld [smem:[#allocation2 + $0x60]]
    %s383 = sld [smem:[#allocation2 + $0x61]]
    %s384 = sld [smem:[#allocation2 + $0x62]]
    %v385 = vstv %s376
    %v386 = vmul.f32 %v385, %v32
    %v387 = vstv %s377
    %v388 = vmul.f32 %v387, %v36
    %v389 = vadd.f32 %v386, %v388
    %v390 = vstv %s378
    %v391 = vadd.f32 %v389, %v390
    %v392 = vstv %s379
    %v393 = vmul.f32 %v392, %v32
    %v394 = vstv %s380
    %v395 = vmul.f32 %v394, %v36
    %v396 = vadd.f32 %v393, %v395
    %v397 = vstv %s381
    %v398 = vadd.f32 %v396, %v397
    %v399 = vstv %s382
    %v400 = vmul.f32 %v399, %v32
    %v401 = vstv %s383
    %v402 = vmul.f32 %v401, %v36
    %v403 = vadd.f32 %v400, %v402
    %v404 = vstv %s384
    %v405 = vadd.f32 %v403, %v404
    %v406 = vmin.f32 %v391, %v398
    %v407 = vmin.f32 %v406, %v405
    %vm408 = vcmp.ge.f32.partialorder %v407, 0.0
    %vm409 = vmor %vm375, %vm408
    %s410 = sld [smem:[#allocation2 + $0x63]]
    %s411 = sld [smem:[#allocation2 + $0x64]]
    %s412 = sld [smem:[#allocation2 + $0x65]]
    %s413 = sld [smem:[#allocation2 + $0x66]]
    %s414 = sld [smem:[#allocation2 + $0x67]]
    %s415 = sld [smem:[#allocation2 + $0x68]]
    %s416 = sld [smem:[#allocation2 + $0x69]]
    %s417 = sld [smem:[#allocation2 + $0x6a]]
    %s418 = sld [smem:[#allocation2 + $0x6b]]
    %v419 = vstv %s410
    %v420 = vmul.f32 %v419, %v32
    %v421 = vstv %s411
    %v422 = vmul.f32 %v421, %v36
    %v423 = vadd.f32 %v420, %v422
    %v424 = vstv %s412
    %v425 = vadd.f32 %v423, %v424
    %v426 = vstv %s413
    %v427 = vmul.f32 %v426, %v32
    %v428 = vstv %s414
    %v429 = vmul.f32 %v428, %v36
    %v430 = vadd.f32 %v427, %v429
    %v431 = vstv %s415
    %v432 = vadd.f32 %v430, %v431
    %v433 = vstv %s416
    %v434 = vmul.f32 %v433, %v32
    %v435 = vstv %s417
    %v436 = vmul.f32 %v435, %v36
    %v437 = vadd.f32 %v434, %v436
    %v438 = vstv %s418
    %v439 = vadd.f32 %v437, %v438
    %v440 = vmin.f32 %v425, %v432
    %v441 = vmin.f32 %v440, %v439
    %vm442 = vcmp.ge.f32.partialorder %v441, 0.0
    %vm443 = vmor %vm409, %vm442
    %v444 = vsel %vm443, 1, 0
    %v445 = vcvt.s32.f32 %v444
    %446 = vst [vmem:[%s3] sm:$0xff] %v445
    %v447 = vld [vmem:[%s1] sm:$0xff]
    %v448 = vsub.f32 %v445, %v447
    %v449 = vmul.f32 %v448, %v448
    %450 = vadd.xlane.f32.xlu0 %v449
    %v451 = vpop.xlane.xlu0 %450
    %v452 = vrot.slane %v451, 4
    %v453 = vadd.f32 %v451, %v452
    %v454 = vrot.slane %v453, 2
    %v455 = vadd.f32 %v453, %v454
    %v456 = vrot.slane %v455, 1
    %v457 = vadd.f32 %v455, %v456
    %s458 = vtos %v457
    %s459 = scalar_lea.smem [#allocation5], 0
    %460 = sst [smem:[%s459]] %s458
    // Predicated region
    $region14: #{model_morphing_forward.1} parent=1 // pred_check
      _
    $region15: #{model_morphing_forward.1} parent=1 // pred_check_branch
      %462 = sbr.rel (0) target = $region17
    $region16: #{model_morphing_forward.1} parent=1 // pred_region
      %464 = vsyncadd [#allocation3], 0
      %s466 = sshll.u32 %s2, 4
      %s467 = int_to_ptr.hbm [resolvable:$true] %s466
      %469 = dma.smem_to_hbm [#allocation5], 16, %s467, [#allocation3]
    $region17: #{model_morphing_forward.1} parent=1 // pred_fallthru
      _
    // Predicated region
    $region18: #{model_morphing_forward.1} parent=1 // pred_check
      _
    $region19: #{model_morphing_forward.1} parent=1 // pred_check_branch
      %471 = sbr.rel (0) target = $region21
    $region20: #{model_morphing_forward.1} parent=1 // pred_region
      _
    $region21: #{model_morphing_forward.1} parent=1 // pred_fallthru
      _
    // Predicated region
    $region22: #{model_morphing_forward.1} parent=1 // pred_check
      _
    $region23: #{model_morphing_forward.1} parent=1 // pred_check_branch
      %473 = sbr.rel (0) target = $region25
    $region24: #{model_morphing_forward.1} parent=1 // pred_region
      %475 = dma.done [#allocation3], 16
    $region25: #{model_morphing_forward.1} parent=1 // pred_fallthru
      _
    // Predicated region
    $region26: #{model_morphing_forward.1} parent=1 // pred_check
      _
    $region27: #{model_morphing_forward.1} parent=1 // pred_check_branch
      %477 = sbr.rel (0) target = $region29
    $region28: #{model_morphing_forward.1} parent=1 // pred_region
      _
    $region29: #{model_morphing_forward.1} parent=1 // pred_fallthru
      _
    %478 = sfence
    %479 = vsyncpa [#allocation3], 1
    %480 = vsyncpa [#allocation4], 1

</llo_original>
